<compile_context>
chip_gen: v7x
topology: tpu7x:2x2x1
jax: 0.10.0
libtpu: 0.0.40
codegen_flags: <defaults>
</compile_context>

<pallas_src>
import functools

import jax
import jax.numpy as jnp
from jax.experimental import pallas as pl
from jax.experimental.pallas import tpu as pltpu

_MIN_GRID_STEPS = 8  # >= 2x pipeline depth; keeps both v7x TCs busy.


def _simam_kernel(x_ref, o_ref, *, inv_hw, inv_n, e_lambda, compute_dtype):
    """Block: (row_tile, H*W); each row is one (b, c) spatial slice."""
    x_io = x_ref[...]
    xf = x_io.astype(jnp.float32)

    # One fused reduction pass, f32 accumulation:
    #   mu = sum(x) / hw
    #   s  = sum((x - mu)^2) = sum(x^2) - sum(x)^2 / hw   (clamped >= 0,
    #        the algebraic form can go slightly negative from cancellation).
    sum_x = jnp.sum(xf, axis=-1, keepdims=True)
    sum_x2 = jnp.sum(xf * xf, axis=-1, keepdims=True)
    mu = sum_x * inv_hw
    s = jnp.maximum(sum_x2 - sum_x * mu, 0.0)

    # y = d2 / (4 * (s / n + e_lambda)) + 0.5 ; divide -> EUP approx recip
    # (per-row (rows, 1) tensor, essentially free).
    inv_denom = pl.reciprocal(4.0 * (s * inv_n + e_lambda), approx=True)

    # Elementwise pass in compute_dtype (bf16 on v6e/v7x for bf16 inputs,
    # f32 everywhere else).
    if jnp.dtype(compute_dtype) == jnp.dtype(jnp.float32):
        xc = xf
    else:
        xc = x_io.astype(compute_dtype)
    d = xc - mu.astype(compute_dtype)
    d2 = d * d
    y = d2 * inv_denom.astype(compute_dtype) + 0.5
    o_ref[...] = (xc * jax.nn.sigmoid(y)).astype(o_ref.dtype)


def _vmem_capacity_bytes():
    try:
        return int(pltpu.get_tpu_info().vmem_capacity_bytes)
    except Exception:
        # Fall back to the SMALLEST target (v7x = 64 MiB) so a failed query
        # never sizes a working set that cannot exist on-chip.
        return 64 * 1024 * 1024


def _bf16_vector_math_ok():
    """v6e / v7x have bf16 VALU/EUP; v5e and older do not."""
    try:
        kind = jax.devices()[0].device_kind.lower()
    except Exception:
        return False
    return ("v6" in kind) or ("v7" in kind)


def _pick_row_tile(bc, hw, itemsize, vmem_cap):
    """Row tile sized for pipelining, not for maximal VMEM occupancy."""
    align = 8 if itemsize >= 4 else 16  # sublane packing (f32 vs bf16/f16)
    if bc <= align:
        # Genuinely tiny: one full-extent block (block dim == array dim is
        # always legal, even when not a multiple of the sublane packing).
        return bc
    # (a) ~6 MiB of I/O (in + out) per block: amortizes per-step overhead
    #     (>=85% of HBM roofline) while leaving several grid steps.
    target_io_bytes = 6 << 20
    row_tile = target_io_bytes // (hw * 2 * itemsize)
    # (b) VMEM fit: double-buffered in/out blocks + ~3 f32-equivalent block
    #     temps within 50% of physical VMEM (headroom for compiler scratch).
    per_row_resident = hw * (4 * itemsize + 3 * 4)
    row_tile = min(row_tile, (vmem_cap // 2) // max(per_row_resident, 1))
    # (c) keep >= _MIN_GRID_STEPS grid steps so DMA overlaps compute and the
    #     "parallel" axis can shard across both v7x TensorCores.
    row_tile = min(row_tile, pl.cdiv(bc, _MIN_GRID_STEPS))
    # (d) hard cap on per-step latency; round down to the packing multiple.
    row_tile = min(row_tile, 1024)
    row_tile = max(align, (row_tile // align) * align)
    return row_tile


def simam(x, e_lambda=1e-4):
    """SimAM forward. x: (B, C, H, W). Returns same shape/dtype."""
    b, c, h, w = x.shape
    hw = h * w
    assert hw > 1, "SimAM needs H*W > 1 (n = H*W - 1 is used as a divisor)"
    n = float(hw - 1)

    bc = b * c
    x2d = x.reshape(bc, hw)
    itemsize = jnp.dtype(x.dtype).itemsize

    vmem_cap = _vmem_capacity_bytes()
    row_tile = _pick_row_tile(bc, hw, itemsize, vmem_cap)
    grid = (pl.cdiv(bc, row_tile),)
    # TODO(synk): for hw < 128, pack k spatial slices per lane row
    # ((bc/k, k*hw) layout with segmented in-kernel sums) to avoid masked
    # vst.msk stores; for extremely large hw, add a second "arbitrary" grid
    # axis with a split (two-pass) reduction instead of a whole-row block.

    compute_dtype = (
        jnp.bfloat16
        if (jnp.dtype(x.dtype) == jnp.dtype(jnp.bfloat16) and _bf16_vector_math_ok())
        else jnp.float32
    )

    # Scoped VMEM: sized for the chosen block, capped at 75% of physical
    # capacity (~48 MiB on v7x) to leave headroom for compiler scratch.
    block_bytes = row_tile * hw * (4 * itemsize + 3 * 4)
    vmem_limit = int(min(vmem_cap * 3 // 4,
                         max(32 << 20, int(block_bytes * 1.5) + (4 << 20))))

    kernel = functools.partial(
        _simam_kernel,
        inv_hw=1.0 / float(hw),
        inv_n=1.0 / n,
        e_lambda=float(e_lambda),
        compute_dtype=compute_dtype,
    )

    out2d = pl.pallas_call(
        kernel,
        out_shape=jax.ShapeDtypeStruct((bc, hw), x.dtype),
        grid_spec=pltpu.PrefetchScalarGridSpec(
            num_scalar_prefetch=0,
            grid=grid,
            in_specs=[pl.BlockSpec((row_tile, hw), lambda i: (i, 0))],
            out_specs=pl.BlockSpec((row_tile, hw), lambda i: (i, 0)),
        ),
        compiler_params=pltpu.CompilerParams(
            dimension_semantics=("parallel",),  # shards rows across TCs (v7x)
            vmem_limit_bytes=vmem_limit,
        ),
        cost_estimate=pl.CostEstimate(
            flops=10 * bc * hw,
            transcendentals=bc * hw,
            bytes_accessed=2 * bc * hw * itemsize,
        ),
    )(x2d)

    return out2d.reshape(b, c, h, w)


def simam_ref(x, e_lambda=1e-4):
    """Pure-JAX reference mirroring the PyTorch forward."""
    b, c, h, w = x.shape
    n = w * h - 1
    mu = jnp.mean(x, axis=(2, 3), keepdims=True)
    d2 = (x - mu) ** 2
    s = jnp.sum(d2, axis=(2, 3), keepdims=True)
    y = d2 / (4.0 * (s / n + e_lambda)) + 0.5
    return x * jax.nn.sigmoid(y)


if __name__ == "__main__":
    key = jax.random.PRNGKey(0)
    k1, k2, k3 = jax.random.split(key, 3)

    # 1) Small f32 case (bc=8 rows cannot be split below sublane packing,
    #    so this legitimately uses a single full-extent block).
    B, C, H, W = 2, 4, 16, 16
    x = jax.random.normal(k1, (B, C, H, W), dtype=jnp.float32)
    out = jax.block_until_ready(simam(x))
    ref = simam_ref(x)
    assert out.shape == x.shape and out.dtype == x.dtype
    assert jnp.allclose(out, ref, atol=1e-2, rtol=1e-2), (
        float(jnp.max(jnp.abs(out - ref))))

    # 2) Multi-step grid with a ragged edge block (bc=66 -> 9 grid steps).
    x2 = jax.random.normal(k2, (2, 33, 16, 16), dtype=jnp.float32)
    out2 = jax.block_until_ready(simam(x2))
    ref2 = simam_ref(x2)
    assert jnp.allclose(out2, ref2, atol=1e-2, rtol=1e-2), (
        float(jnp.max(jnp.abs(out2 - ref2))))

    # 3) bf16 inputs (bf16 elementwise path on v6e/v7x, f32 path on v5e).
    #    Tolerance loosened for bf16 rounding + EUP approximate reciprocal.
    x3 = jax.random.normal(k3, (2, 48, 16, 16), dtype=jnp.float32).astype(
        jnp.bfloat16)
    out3 = jax.block_until_ready(simam(x3))
    ref3 = simam_ref(x3.astype(jnp.float32))
    assert out3.dtype == jnp.bfloat16
    assert jnp.allclose(out3.astype(jnp.float32), ref3, atol=8e-2, rtol=8e-2), (
        float(jnp.max(jnp.abs(out3.astype(jnp.float32) - ref3))))

    print("KERNEL_OK")
</pallas_src>

<mosaic_0001>
module attributes {stable_mosaic.version = 11 : i64} {
  func.func @_simam_kernel(%arg0: i32, %arg1: memref<8x256xf32, #tpu.memory_space<vmem>>, %arg2: memref<8x256xf32, #tpu.memory_space<vmem>>) attributes {dimension_semantics = [#tpu.dimension_semantics<parallel>], iteration_bounds = array<i64: 1>, scalar_prefetch = 0 : i64, scratch_operands = 0 : i64, tpu.core_type = #tpu.core_type<tc>, window_params = [{transform_indices = @transform_0, window_bounds = array<i64: 8, 256>}, {transform_indices = @transform_1, window_bounds = array<i64: 8, 256>}]} {
    %c0 = arith.constant 0 : index
    %c0_0 = arith.constant 0 : index
    %0 = vector.load %arg1[%c0, %c0_0] : memref<8x256xf32, #tpu.memory_space<vmem>>, vector<8x256xf32>
    %cst = arith.constant dense<0.000000e+00> : vector<8xf32>
    %1 = vector.multi_reduction <add>, %0, %cst [1] : vector<8x256xf32> to vector<8xf32>
    %2 = vector.shape_cast %1 : vector<8xf32> to vector<8x1xf32>
    %3 = arith.mulf %0, %0 : vector<8x256xf32>
    %cst_1 = arith.constant dense<0.000000e+00> : vector<8xf32>
    %4 = vector.multi_reduction <add>, %3, %cst_1 [1] : vector<8x256xf32> to vector<8xf32>
    %5 = vector.shape_cast %4 : vector<8xf32> to vector<8x1xf32>
    %cst_2 = arith.constant 3.906250e-03 : f32
    %6 = vector.broadcast %cst_2 : f32 to vector<8x1xf32>
    %7 = arith.mulf %2, %6 : vector<8x1xf32>
    %8 = arith.mulf %2, %7 : vector<8x1xf32>
    %9 = arith.subf %5, %8 : vector<8x1xf32>
    %cst_3 = arith.constant 0.000000e+00 : f32
    %10 = vector.broadcast %cst_3 : f32 to vector<8x1xf32>
    %11 = arith.maximumf %9, %10 : vector<8x1xf32>
    %cst_4 = arith.constant 0.00392156886 : f32
    %12 = vector.broadcast %cst_4 : f32 to vector<8x1xf32>
    %13 = arith.mulf %11, %12 : vector<8x1xf32>
    %cst_5 = arith.constant 9.99999974E-5 : f32
    %14 = vector.broadcast %cst_5 : f32 to vector<8x1xf32>
    %15 = arith.addf %13, %14 : vector<8x1xf32>
    %cst_6 = arith.constant 4.000000e+00 : f32
    %16 = vector.broadcast %cst_6 : f32 to vector<8x1xf32>
    %17 = arith.mulf %16, %15 : vector<8x1xf32>
    %18 = tpu.reciprocal %17 {approx = true} : vector<8x1xf32> -> vector<8x1xf32>
    %19 = vector.broadcast %7 : vector<8x1xf32> to vector<8x256xf32>
    %20 = arith.subf %0, %19 : vector<8x256xf32>
    %21 = arith.mulf %20, %20 : vector<8x256xf32>
    %22 = vector.broadcast %18 : vector<8x1xf32> to vector<8x256xf32>
    %23 = arith.mulf %21, %22 : vector<8x256xf32>
    %cst_7 = arith.constant 5.000000e-01 : f32
    %24 = vector.broadcast %cst_7 : f32 to vector<8x256xf32>
    %25 = arith.addf %23, %24 : vector<8x256xf32>
    %26 = arith.negf %25 : vector<8x256xf32>
    %27 = math.exp %26 : vector<8x256xf32>
    %cst_8 = arith.constant 1.000000e+00 : f32
    %28 = vector.broadcast %cst_8 : f32 to vector<8x256xf32>
    %29 = arith.addf %28, %27 : vector<8x256xf32>
    %30 = arith.divf %28, %29 : vector<8x256xf32>
    %31 = arith.mulf %0, %30 : vector<8x256xf32>
    %c0_9 = arith.constant 0 : index
    %c0_10 = arith.constant 0 : index
    %32 = vector.load %arg2[%c0_9, %c0_10] : memref<8x256xf32, #tpu.memory_space<vmem>>, vector<8x256xf32>
    tpu.vector_store %arg2[%c0_9, %c0_10], %31 {strides = array<i32>} : memref<8x256xf32, #tpu.memory_space<vmem>>, vector<8x256xf32>,
    return
  }
  func.func @transform_0(%arg0: i32) -> (i32, i32) {
    %c0_i32 = arith.constant 0 : i32
    %c0_i32_0 = arith.constant 0 : i32
    return %arg0, %c0_i32 : i32, i32
  }
  func.func @transform_1(%arg0: i32) -> (i32, i32) {
    %c0_i32 = arith.constant 0 : i32
    %c0_i32_0 = arith.constant 0 : i32
    return %arg0, %c0_i32 : i32, i32
  }
}

</mosaic_0001>

<llo_original>
// kernel: tpu_custom_call.1
$region0: #{tpu_custom_call.1}
  #allocation0 [shape = 'u32[]', space=smem, size = 0x4, offset = 0x4, fixed_abs, tag = 'smem constant byte address 0x4 - core index']
  #allocation1 [shape = 'u32[144,128]{1,0:T(1,128)}', space=vmem, size = 0x12000, scoped, tag = 'internal scratch']
  %s0 = inlined_call_operand.hbm [shape: f32[8,256], index: 0, kind: input, shape index: {}]
  %s1 = inlined_call_operand.hbm [shape: f32[8,256], index: 1, kind: output, shape index: {}]
  %s2 = sld [smem:[#allocation0]]
  $region18: #{tpu_custom_call.1} parent=0
    _
  %s4 = ssub.s32 1, %s2
  %s5 = scalar_select 0, %s4, %s2
  $region1: #{tpu_custom_call.1} parent=0
    #allocation2 [shape = 'u8[8192]{0}', space=vmem, size = 0x2000, scoped, tag = 'input window, operand 0, single buffered']
    #allocation3 [shape = 's32[1]{0}', space=sflag, size = 0x4, scoped, tag = 'scoped memory for tpu_custom_call.1']
    #allocation4 [shape = 's32[1]{0}', space=sflag, size = 0x4, scoped, tag = 'scoped memory for tpu_custom_call.1']
    #allocation5 [shape = 'u8[8192]{0}', space=vmem, size = 0x2000, scoped, tag = 'output window, operand 0, single buffered']
    %6 = vsyncpa [#allocation3], 0
    %7 = vsyncpa [#allocation4], 0
    // Predicated region
    $region2: #{tpu_custom_call.1} parent=1 // pred_check
      _
    $region3: #{tpu_custom_call.1} parent=1 // pred_check_branch
      %9 = sbr.rel (0) target = $region5
    $region4: #{tpu_custom_call.1} parent=1 // pred_region
      %s11 = ssub.s32 256, 256
      %12 = vsyncadd [#allocation3], %s11
      %s14 = sshll.u32 [#allocation2], 4
      %s15 = int_to_ptr.vmem [resolvable:$true] %s14
      %17 = dma.hbm_to_vmem [thread:$0]  %s0, 256, %s15, [#allocation3]
    $region5: #{tpu_custom_call.1} parent=1 // pred_fallthru
      _
    // Predicated region
    $region6: #{tpu_custom_call.1} parent=1 // pred_check
      _
    $region7: #{tpu_custom_call.1} parent=1 // pred_check_branch
      %19 = sbr.rel (0) target = $region9
    $region8: #{tpu_custom_call.1} parent=1 // pred_region
      %20 = dma.done [#allocation3], 256
    $region9: #{tpu_custom_call.1} parent=1 // pred_fallthru
      _
    %v21 = vld [vmem:[#allocation2] sm:$0xff]
    %v22 = vld [vmem:[#allocation2 + $0x8] sm:$0xff]
    %v23 = vadd.f32 %v21, %v22
    %24 = vadd.xlane.f32.xlu0 %v23
    %v25 = vpop.xlane.xlu0 %24
    %v26 = vmul.f32 %v21, %v21
    %v27 = vmul.f32 %v22, %v22
    %v28 = vadd.f32 %v26, %v27
    %29 = vadd.xlane.f32.xlu0 %v28
    %v30 = vpop.xlane.xlu0 %29
    %v31 = vmul.f32 %v25, 0.00390625
    %v32 = vmul.f32 %v25, %v31
    %v33 = vsub.f32 %v30, %v32
    %v34 = vmax.f32 %v33, 0.0
    %v35 = vmul.f32 %v34, 0.003921569
    %v36 = vadd.f32 %v35, 0.0001
    %v37 = vmul.f32 %v36, 4.0
    %v38 = vrcp.pop %v37
    %v39 = vsub.f32 %v21, %v31
    %v40 = vsub.f32 %v22, %v31
    %v41 = vmul.f32 %v39, %v39
    %v42 = vmul.f32 %v40, %v40
    %v43 = vmul.f32 %v41, %v38
    %v44 = vmul.f32 %v42, %v38
    %v45 = vadd.f32 %v43, 0.5
    %v46 = vadd.f32 %v44, 0.5
    %v47 = vxor.u32 %v45, 2147483648
    %v48 = vxor.u32 %v46, 2147483648
    %v49 = vmul.f32 %v47, 1.442695
    %v50 = vpow.pop %v49
    %v51 = vmul.f32 %v48, 1.442695
    %v52 = vpow.pop %v51
    %v53 = vadd.f32 %v50, 1.0
    %v54 = vadd.f32 %v52, 1.0
    %v55 = vrcp.pop %v53
    %v56 = vmul.f32 1.0, %v55
    %v57 = vrcp.pop %v54
    %v58 = vmul.f32 1.0, %v57
    %v59 = vmul.f32 %v21, %v56
    %v60 = vmul.f32 %v22, %v58
    %61 = vst [vmem:[#allocation5] sm:$0xff] %v59
    %62 = vst [vmem:[#allocation5 + $0x8] sm:$0xff] %v60
    // Predicated region
    $region10: #{tpu_custom_call.1} parent=1 // pred_check
      _
    $region11: #{tpu_custom_call.1} parent=1 // pred_check_branch
      %64 = sbr.rel (0) target = $region13
    $region12: #{tpu_custom_call.1} parent=1 // pred_region
      %s66 = ssub.s32 256, 256
      %67 = vsyncadd [#allocation4], %s66
      %s69 = sshll.u32 [#allocation5], 4
      %s70 = int_to_ptr.vmem [resolvable:$true] %s69
      %72 = dma.vmem_to_hbm [thread:$0]  %s70, 256, %s1, [#allocation4]
    $region13: #{tpu_custom_call.1} parent=1 // pred_fallthru
      _
    // Predicated region
    $region14: #{tpu_custom_call.1} parent=1 // pred_check
      _
    $region15: #{tpu_custom_call.1} parent=1 // pred_check_branch
      %74 = sbr.rel (0) target = $region17
    $region16: #{tpu_custom_call.1} parent=1 // pred_region
      %75 = dma.done [#allocation4], 256
    $region17: #{tpu_custom_call.1} parent=1 // pred_fallthru
      _
    %76 = vsyncpa [#allocation3], 1
    %77 = vsyncpa [#allocation4], 1

</llo_original>
